<compile_context>
chip_gen: v7x
topology: tpu7x:2x2x1
jax: 0.10.0
libtpu: 0.0.40
codegen_flags: <defaults>
</compile_context>

<pallas_src>
import functools

import jax
import jax.numpy as jnp
from jax import lax
from jax.experimental import pallas as pl
from jax.experimental.pallas import tpu as pltpu


def _sa_kernel(x_ref, p_ref, o_ref, *, eps, hw):
    """Fused SA gate + channel_shuffle for one (nb, 2, R, hw) block.

    x_ref : (nb, 2, R, hw)  input rows; axis 1 is the channel_shuffle half index k
    p_ref : (6, 2, R, 1)    zero-padded per-(half, row) params
                            order: cweight, cbias, gn_gamma, gn_beta, sweight, sbias
    o_ref : (nb, R, 2*hw)   shuffled output; lane range [k*hw,(k+1)*hw) holds half k
    """
    x = x_ref[...].astype(jnp.float32)                   # (nb, 2, R, hw)
    p = p_ref[...].astype(jnp.float32)                   # (6, 2, R, 1)
    cw, cb, gg, gb, sw, sb = (p[i] for i in range(6))    # each (2, R, 1)

    # single-pass per-(sample, channel) spatial statistics (lane-axis reductions)
    m = jnp.mean(x, axis=-1, keepdims=True)              # (nb, 2, R, 1)
    ex2 = jnp.mean(x * x, axis=-1, keepdims=True)
    var = jnp.maximum(ex2 - m * m, 0.0)                  # biased var, as torch GN
    rs = lax.rsqrt(var + eps)

    # Unified gate: out = x * sigmoid(alpha * x + beta)
    #  channel half (sw=sb=gg=gb=0): alpha = 0,           beta = cw*m + cb
    #  spatial half (cw=cb=0):       alpha = sw*gamma*rs, beta = sw*(gbeta - m*gamma*rs) + sb
    alpha = sw * gg * rs                                  # (nb, 2, R, 1)
    beta = sw * (gb - m * gg * rs) + sb + cw * m + cb
    res = (x * jax.nn.sigmoid(alpha * x + beta)).astype(o_ref.dtype)

    # fold channel_shuffle(groups=2): half k lands in lane range [k*hw, (k+1)*hw)
    o_ref[:, :, 0:hw] = res[:, 0]
    o_ref[:, :, hw:2 * hw] = res[:, 1]


def _tpu_kind():
    try:
        return jax.devices()[0].device_kind.lower()
    except Exception:
        return ""


def _choose_tiling(b, rt, hw, itemsize, kind):
    """Pick (batches-per-step, rows-per-step, vmem_limit_bytes)."""
    if "v7" in kind:
        target, phys_cap, min_steps = 6 << 20, 56 << 20, 4   # 2 TCs, 64 MiB VMEM/TC
    elif "v6" in kind:
        target, phys_cap, min_steps = 4 << 20, 100 << 20, 1  # 1 TC, 128 MiB VMEM
    elif "v5" in kind:
        target, phys_cap, min_steps = 2 << 20, 64 << 20, 1
    else:
        target, phys_cap, min_steps = 2 << 20, 48 << 20, 1

    row_bytes = 2 * hw * itemsize            # one row across both shuffle halves
    per_batch = rt * row_bytes
    # valid row-block sizes: sublane-dense multiples of 8, or the full extent
    row_divs = [d for d in range(1, rt + 1) if rt % d == 0 and (d % 8 == 0 or d == rt)]

    if per_batch <= target:                  # whole batches per step
        r = rt
        nb = max(d for d in range(1, b + 1) if b % d == 0 and d * per_batch <= target)
    else:                                    # split the flattened row axis
        nb = 1
        rows_target = max(1, target // row_bytes)
        le = [d for d in row_divs if d <= rows_target]
        r = max(le) if le else min(row_divs)

    # v7x only: keep enough grid steps so both TensorCores get pipelined work
    for _ in range(16):
        if (b // nb) * (rt // r) >= min_steps:
            break
        if nb > 1:
            nb = max(d for d in range(1, nb) if b % d == 0)
        else:
            smaller = [d for d in row_divs if d < r]
            if not smaller:
                break
            r = max(smaller)

    block_f32 = nb * 2 * r * hw * 4
    vmem_limit = min(phys_cap, max(32 << 20, 6 * block_f32 + (8 << 20)))
    return nb, r, int(vmem_limit)


def sa_forward(x, params, groups, eps=1e-5):
    """Pallas forward of the SA module. x: (b, c, h, w), c % (2*groups) == 0."""
    b, c, h, w = x.shape
    assert c % (2 * groups) == 0
    half = c // (2 * groups)                 # channels per branch within an SA group
    rt = c // 2                              # rows per shuffle half
    hw = h * w

    # lane-dense input view; axis 1 is the channel_shuffle half index k (free view)
    xv = x.reshape(b, 2, rt, hw)

    # zero-padded per-channel params, replicated per original channel and laid out
    # (6, k, row, 1) so the kernel broadcasts them as sublane-resident columns
    f32 = jnp.float32
    zeros = jnp.zeros((half,), f32)
    packed_pg = jnp.stack([
        jnp.concatenate([params["cweight"].astype(f32), zeros]),
        jnp.concatenate([params["cbias"].astype(f32), zeros]),
        jnp.concatenate([zeros, params["gn_gamma"].astype(f32)]),
        jnp.concatenate([zeros, params["gn_beta"].astype(f32)]),
        jnp.concatenate([zeros, params["sweight"].astype(f32)]),
        jnp.concatenate([zeros, params["sbias"].astype(f32)]),
    ])                                                       # (6, 2*half)
    packed = jnp.tile(packed_pg, (1, groups)).reshape(6, 2, rt, 1)

    nb, r, vmem_limit = _choose_tiling(b, rt, hw, jnp.dtype(x.dtype).itemsize,
                                       _tpu_kind())

    out = pl.pallas_call(
        functools.partial(_sa_kernel, eps=eps, hw=hw),
        out_shape=jax.ShapeDtypeStruct((b, rt, 2 * hw), x.dtype),
        grid=(b // nb, rt // r),
        in_specs=[
            pl.BlockSpec((nb, 2, r, hw), lambda i, j: (i, 0, j, 0)),   # input rows
            pl.BlockSpec((6, 2, r, 1), lambda i, j: (0, 0, j, 0)),     # packed params
        ],
        out_specs=pl.BlockSpec((nb, r, 2 * hw), lambda i, j: (i, j, 0)),
        compiler_params=pltpu.CompilerParams(
            dimension_semantics=("parallel", "parallel"),
            vmem_limit_bytes=vmem_limit,
        ),
    )(xv, packed)

    # channel_shuffle is already baked into the layout: this reshape is a free view
    return out.reshape(b, c, h, w)


def sa_reference(x, params, groups):
    """Pure-JAX reference mirroring the PyTorch SA.forward."""
    b, c, h, w = x.shape
    cpg = c // groups
    half = cpg // 2
    gx = x.reshape(b * groups, cpg, h, w).astype(jnp.float32)
    x0, x1 = gx[:, :half], gx[:, half:]

    # channel attention branch
    xn = jnp.mean(x0, axis=(2, 3), keepdims=True)
    xn = params["cweight"][None, :, None, None] * xn + params["cbias"][None, :, None, None]
    xn = x0 * jax.nn.sigmoid(xn)

    # spatial attention branch: GroupNorm(num_groups == num_channels) + affine + gate
    mu = jnp.mean(x1, axis=(2, 3), keepdims=True)
    var = jnp.mean((x1 - mu) ** 2, axis=(2, 3), keepdims=True)
    xs = (x1 - mu) / jnp.sqrt(var + 1e-5)
    xs = xs * params["gn_gamma"][None, :, None, None] + params["gn_beta"][None, :, None, None]
    xs = params["sweight"][None, :, None, None] * xs + params["sbias"][None, :, None, None]
    xs = x1 * jax.nn.sigmoid(xs)

    out = jnp.concatenate([xn, xs], axis=1).reshape(b, c, h, w)
    out = out.reshape(b, 2, c // 2, h, w).transpose(0, 2, 1, 3, 4).reshape(b, c, h, w)
    return out.astype(x.dtype)


if __name__ == "__main__":
    # SA(channel=C, groups=GROUPS); half = C // (2*GROUPS)
    # (groups=4 keeps the test small; the C2f_SA default of groups=64 needs C >= 128)
    B, C, H, W = 2, 32, 16, 16
    GROUPS = 4
    half = C // (2 * GROUPS)

    key = jax.random.PRNGKey(0)
    ks = jax.random.split(key, 7)
    params = {
        "cweight": 0.5 * jax.random.normal(ks[0], (half,), jnp.float32),
        "cbias": 1.0 + 0.1 * jax.random.normal(ks[1], (half,), jnp.float32),
        "sweight": 0.5 * jax.random.normal(ks[2], (half,), jnp.float32),
        "sbias": 1.0 + 0.1 * jax.random.normal(ks[3], (half,), jnp.float32),
        "gn_gamma": 1.0 + 0.1 * jax.random.normal(ks[4], (half,), jnp.float32),
        "gn_beta": 0.1 * jax.random.normal(ks[5], (half,), jnp.float32),
    }
    x = jax.random.normal(ks[6], (B, C, H, W), dtype=jnp.float32)

    out = jax.block_until_ready(sa_forward(x, params, GROUPS))
    ref = sa_reference(x, params, GROUPS)

    assert out.shape == (B, C, H, W)
    assert out.dtype == x.dtype
    max_err = float(jnp.max(jnp.abs(out.astype(jnp.float32) - ref.astype(jnp.float32))))
    assert jnp.allclose(out.astype(jnp.float32), ref.astype(jnp.float32),
                        atol=1e-4, rtol=1e-4), max_err
    print("KERNEL_OK")
</pallas_src>

<mosaic_0001>
module attributes {stable_mosaic.version = 11 : i64} {
  func.func @_sa_kernel(%arg0: i32, %arg1: i32, %arg2: memref<2x2x16x256xf32, #tpu.memory_space<vmem>>, %arg3: memref<6x2x16x1xf32, #tpu.memory_space<vmem>>, %arg4: memref<2x16x512xf32, #tpu.memory_space<vmem>>) attributes {dimension_semantics = [#tpu.dimension_semantics<parallel>, #tpu.dimension_semantics<parallel>], iteration_bounds = array<i64: 1, 1>, scalar_prefetch = 0 : i64, scratch_operands = 0 : i64, tpu.core_type = #tpu.core_type<tc>, window_params = [{transform_indices = @transform_0, window_bounds = array<i64: 2, 2, 16, 256>}, {transform_indices = @transform_1, window_bounds = array<i64: 6, 2, 16, 1>}, {transform_indices = @transform_2, window_bounds = array<i64: 2, 16, 512>}]} {
    %c0 = arith.constant 0 : index
    %c0_0 = arith.constant 0 : index
    %c0_1 = arith.constant 0 : index
    %c0_2 = arith.constant 0 : index
    %0 = vector.load %arg2[%c0, %c0_0, %c0_1, %c0_2] : memref<2x2x16x256xf32, #tpu.memory_space<vmem>>, vector<2x2x16x256xf32>
    %c0_3 = arith.constant 0 : index
    %c0_4 = arith.constant 0 : index
    %c0_5 = arith.constant 0 : index
    %c0_6 = arith.constant 0 : index
    %1 = vector.load %arg3[%c0_3, %c0_4, %c0_5, %c0_6] : memref<6x2x16x1xf32, #tpu.memory_space<vmem>>, vector<6x2x16x1xf32>
    %2 = vector.extract_strided_slice %1 {offsets = [0, 0, 0, 0], sizes = [1, 2, 16, 1], strides = [1, 1, 1, 1]} : vector<6x2x16x1xf32> to vector<1x2x16x1xf32>
    %3 = vector.shape_cast %2 : vector<1x2x16x1xf32> to vector<2x16x1xf32>
    %4 = vector.extract_strided_slice %1 {offsets = [1, 0, 0, 0], sizes = [1, 2, 16, 1], strides = [1, 1, 1, 1]} : vector<6x2x16x1xf32> to vector<1x2x16x1xf32>
    %5 = vector.shape_cast %4 : vector<1x2x16x1xf32> to vector<2x16x1xf32>
    %6 = vector.extract_strided_slice %1 {offsets = [2, 0, 0, 0], sizes = [1, 2, 16, 1], strides = [1, 1, 1, 1]} : vector<6x2x16x1xf32> to vector<1x2x16x1xf32>
    %7 = vector.shape_cast %6 : vector<1x2x16x1xf32> to vector<2x16x1xf32>
    %8 = vector.extract_strided_slice %1 {offsets = [3, 0, 0, 0], sizes = [1, 2, 16, 1], strides = [1, 1, 1, 1]} : vector<6x2x16x1xf32> to vector<1x2x16x1xf32>
    %9 = vector.shape_cast %8 : vector<1x2x16x1xf32> to vector<2x16x1xf32>
    %10 = vector.extract_strided_slice %1 {offsets = [4, 0, 0, 0], sizes = [1, 2, 16, 1], strides = [1, 1, 1, 1]} : vector<6x2x16x1xf32> to vector<1x2x16x1xf32>
    %11 = vector.shape_cast %10 : vector<1x2x16x1xf32> to vector<2x16x1xf32>
    %12 = vector.extract_strided_slice %1 {offsets = [5, 0, 0, 0], sizes = [1, 2, 16, 1], strides = [1, 1, 1, 1]} : vector<6x2x16x1xf32> to vector<1x2x16x1xf32>
    %13 = vector.shape_cast %12 : vector<1x2x16x1xf32> to vector<2x16x1xf32>
    %cst = arith.constant dense<0.000000e+00> : vector<2x2x16xf32>
    %14 = vector.multi_reduction <add>, %0, %cst [3] : vector<2x2x16x256xf32> to vector<2x2x16xf32>
    %15 = vector.shape_cast %14 : vector<2x2x16xf32> to vector<2x2x16x1xf32>
    %cst_7 = arith.constant 2.560000e+02 : f32
    %16 = vector.broadcast %cst_7 : f32 to vector<2x2x16x1xf32>
    %17 = arith.divf %15, %16 : vector<2x2x16x1xf32>
    %18 = arith.mulf %0, %0 : vector<2x2x16x256xf32>
    %cst_8 = arith.constant dense<0.000000e+00> : vector<2x2x16xf32>
    %19 = vector.multi_reduction <add>, %18, %cst_8 [3] : vector<2x2x16x256xf32> to vector<2x2x16xf32>
    %20 = vector.shape_cast %19 : vector<2x2x16xf32> to vector<2x2x16x1xf32>
    %cst_9 = arith.constant 2.560000e+02 : f32
    %21 = vector.broadcast %cst_9 : f32 to vector<2x2x16x1xf32>
    %22 = arith.divf %20, %21 : vector<2x2x16x1xf32>
    %23 = arith.mulf %17, %17 : vector<2x2x16x1xf32>
    %24 = arith.subf %22, %23 : vector<2x2x16x1xf32>
    %cst_10 = arith.constant 0.000000e+00 : f32
    %25 = vector.broadcast %cst_10 : f32 to vector<2x2x16x1xf32>
    %26 = arith.maximumf %24, %25 : vector<2x2x16x1xf32>
    %cst_11 = arith.constant 9.99999974E-6 : f32
    %27 = vector.broadcast %cst_11 : f32 to vector<2x2x16x1xf32>
    %28 = arith.addf %26, %27 : vector<2x2x16x1xf32>
    %29 = math.rsqrt %28 : vector<2x2x16x1xf32>
    %30 = arith.mulf %11, %7 : vector<2x16x1xf32>
    %31 = vector.shape_cast %30 : vector<2x16x1xf32> to vector<1x2x16x1xf32>
    %32 = vector.broadcast %31 : vector<1x2x16x1xf32> to vector<2x2x16x1xf32>
    %33 = arith.mulf %32, %29 : vector<2x2x16x1xf32>
    %34 = vector.shape_cast %7 : vector<2x16x1xf32> to vector<1x2x16x1xf32>
    %35 = vector.broadcast %34 : vector<1x2x16x1xf32> to vector<2x2x16x1xf32>
    %36 = arith.mulf %17, %35 : vector<2x2x16x1xf32>
    %37 = arith.mulf %36, %29 : vector<2x2x16x1xf32>
    %38 = vector.shape_cast %9 : vector<2x16x1xf32> to vector<1x2x16x1xf32>
    %39 = vector.broadcast %38 : vector<1x2x16x1xf32> to vector<2x2x16x1xf32>
    %40 = arith.subf %39, %37 : vector<2x2x16x1xf32>
    %41 = vector.shape_cast %11 : vector<2x16x1xf32> to vector<1x2x16x1xf32>
    %42 = vector.broadcast %41 : vector<1x2x16x1xf32> to vector<2x2x16x1xf32>
    %43 = arith.mulf %42, %40 : vector<2x2x16x1xf32>
    %44 = vector.shape_cast %13 : vector<2x16x1xf32> to vector<1x2x16x1xf32>
    %45 = vector.broadcast %44 : vector<1x2x16x1xf32> to vector<2x2x16x1xf32>
    %46 = arith.addf %43, %45 : vector<2x2x16x1xf32>
    %47 = vector.shape_cast %3 : vector<2x16x1xf32> to vector<1x2x16x1xf32>
    %48 = vector.broadcast %47 : vector<1x2x16x1xf32> to vector<2x2x16x1xf32>
    %49 = arith.mulf %48, %17 : vector<2x2x16x1xf32>
    %50 = arith.addf %46, %49 : vector<2x2x16x1xf32>
    %51 = vector.shape_cast %5 : vector<2x16x1xf32> to vector<1x2x16x1xf32>
    %52 = vector.broadcast %51 : vector<1x2x16x1xf32> to vector<2x2x16x1xf32>
    %53 = arith.addf %50, %52 : vector<2x2x16x1xf32>
    %54 = vector.broadcast %33 : vector<2x2x16x1xf32> to vector<2x2x16x256xf32>
    %55 = arith.mulf %54, %0 : vector<2x2x16x256xf32>
    %56 = vector.broadcast %53 : vector<2x2x16x1xf32> to vector<2x2x16x256xf32>
    %57 = arith.addf %55, %56 : vector<2x2x16x256xf32>
    %58 = arith.negf %57 : vector<2x2x16x256xf32>
    %59 = math.exp %58 : vector<2x2x16x256xf32>
    %cst_12 = arith.constant 1.000000e+00 : f32
    %60 = vector.broadcast %cst_12 : f32 to vector<2x2x16x256xf32>
    %61 = arith.addf %60, %59 : vector<2x2x16x256xf32>
    %62 = arith.divf %60, %61 : vector<2x2x16x256xf32>
    %63 = arith.mulf %0, %62 : vector<2x2x16x256xf32>
    %64 = vector.extract_strided_slice %63 {offsets = [0, 0, 0, 0], sizes = [2, 1, 16, 256], strides = [1, 1, 1, 1]} : vector<2x2x16x256xf32> to vector<2x1x16x256xf32>
    %65 = vector.shape_cast %64 : vector<2x1x16x256xf32> to vector<2x16x256xf32>
    %c0_13 = arith.constant 0 : index
    %c0_14 = arith.constant 0 : index
    %c0_15 = arith.constant 0 : index
    %66 = vector.load %arg4[%c0_13, %c0_14, %c0_15] : memref<2x16x512xf32, #tpu.memory_space<vmem>>, vector<2x16x256xf32>
    tpu.vector_store %arg4[%c0_13, %c0_14, %c0_15], %65 {strides = array<i32>} : memref<2x16x512xf32, #tpu.memory_space<vmem>>, vector<2x16x256xf32>,
    %67 = vector.extract_strided_slice %63 {offsets = [0, 1, 0, 0], sizes = [2, 1, 16, 256], strides = [1, 1, 1, 1]} : vector<2x2x16x256xf32> to vector<2x1x16x256xf32>
    %68 = vector.shape_cast %67 : vector<2x1x16x256xf32> to vector<2x16x256xf32>
    %c0_16 = arith.constant 0 : index
    %c0_17 = arith.constant 0 : index
    %c256 = arith.constant 256 : index
    %69 = vector.load %arg4[%c0_16, %c0_17, %c256] : memref<2x16x512xf32, #tpu.memory_space<vmem>>, vector<2x16x256xf32>
    tpu.vector_store %arg4[%c0_16, %c0_17, %c256], %68 {strides = array<i32>} : memref<2x16x512xf32, #tpu.memory_space<vmem>>, vector<2x16x256xf32>,
    return
  }
  func.func @transform_0(%arg0: i32, %arg1: i32) -> (i32, i32, i32, i32) {
    %c0_i32 = arith.constant 0 : i32
    %c0_i32_0 = arith.constant 0 : i32
    %c0_i32_1 = arith.constant 0 : i32
    return %arg0, %c0_i32, %arg1, %c0_i32_0 : i32, i32, i32, i32
  }
  func.func @transform_1(%arg0: i32, %arg1: i32) -> (i32, i32, i32, i32) {
    %c0_i32 = arith.constant 0 : i32
    %c0_i32_0 = arith.constant 0 : i32
    %c0_i32_1 = arith.constant 0 : i32
    %c0_i32_2 = arith.constant 0 : i32
    return %c0_i32, %c0_i32_0, %arg1, %c0_i32_1 : i32, i32, i32, i32
  }
  func.func @transform_2(%arg0: i32, %arg1: i32) -> (i32, i32, i32) {
    %c0_i32 = arith.constant 0 : i32
    %c0_i32_0 = arith.constant 0 : i32
    return %arg0, %arg1, %c0_i32 : i32, i32, i32
  }
}

</mosaic_0001>

<llo_original>
// kernel: tpu_custom_call.1
$region0: #{tpu_custom_call.1}
  #allocation0 [shape = 'u32[]', space=smem, size = 0x4, offset = 0x4, fixed_abs, tag = 'smem constant byte address 0x4 - core index']
  #allocation1 [shape = 'u32[144,128]{1,0:T(1,128)}', space=vmem, size = 0x12000, scoped, tag = 'internal scratch']
  %s0 = inlined_call_operand.vmem [shape: f32[2,2,16,256], index: 0, kind: input, shape index: {}]
  %s1 = inlined_call_operand.vmem [shape: f32[6,2,16,1], index: 1, kind: input, shape index: {}]
  %s2 = inlined_call_operand.hbm [shape: f32[2,16,512], index: 2, kind: output, shape index: {}]
  %s3 = sld [smem:[#allocation0]]
  $region18: #{tpu_custom_call.1} parent=0
    _
  %s5 = ssub.s32 1, %s3
  %s6 = scalar_select 0, %s5, %s3
  $region1: #{tpu_custom_call.1} parent=0
    #allocation2 [shape = 'u8[65536]{0}', space=vmem, size = 0x10000, scoped, tag = 'output window, operand 0, single buffered']
    #allocation3 [shape = 's32[1]{0}', space=sflag, size = 0x4, scoped, tag = 'scoped memory for tpu_custom_call.1']
    %7 = vsyncpa [#allocation3], 0
    // Predicated region
    $region2: #{tpu_custom_call.1} parent=1 // pred_check
      _
    $region3: #{tpu_custom_call.1} parent=1 // pred_check_branch
      %9 = sbr.rel (0) target = $region5
    $region4: #{tpu_custom_call.1} parent=1 // pred_region
      _
    $region5: #{tpu_custom_call.1} parent=1 // pred_fallthru
      _
    // Predicated region
    $region6: #{tpu_custom_call.1} parent=1 // pred_check
      _
    $region7: #{tpu_custom_call.1} parent=1 // pred_check_branch
      %11 = sbr.rel (0) target = $region9
    $region8: #{tpu_custom_call.1} parent=1 // pred_region
      _
    $region9: #{tpu_custom_call.1} parent=1 // pred_fallthru
      _
    %v12 = vld [vmem:[%s0] sm:$0xff]
    %v13 = vld [vmem:[%s0 + $0x8] sm:$0xff]
    %v14 = vld [vmem:[%s0 + $0x10] sm:$0xff]
    %v15 = vld [vmem:[%s0 + $0x18] sm:$0xff]
    %v16 = vld [vmem:[%s0 + $0x20] sm:$0xff]
    %v17 = vld [vmem:[%s0 + $0x28] sm:$0xff]
    %v18 = vld [vmem:[%s0 + $0x30] sm:$0xff]
    %v19 = vld [vmem:[%s0 + $0x38] sm:$0xff]
    %v20 = vld [vmem:[%s0 + $0x40] sm:$0xff]
    %v21 = vld [vmem:[%s0 + $0x48] sm:$0xff]
    %v22 = vld [vmem:[%s0 + $0x50] sm:$0xff]
    %v23 = vld [vmem:[%s0 + $0x58] sm:$0xff]
    %v24 = vld [vmem:[%s0 + $0x60] sm:$0xff]
    %v25 = vld [vmem:[%s0 + $0x68] sm:$0xff]
    %v26 = vld [vmem:[%s0 + $0x70] sm:$0xff]
    %v27 = vld [vmem:[%s0 + $0x78] sm:$0xff]
    %v28 = vld [vmem:[%s1] sm:$0xff]
    %v29 = vld [vmem:[%s1 + $0x8] sm:$0xff]
    %v30 = vld [vmem:[%s1 + $0x10] sm:$0xff]
    %v31 = vld [vmem:[%s1 + $0x18] sm:$0xff]
    %v32 = vld [vmem:[%s1 + $0x20] sm:$0xff]
    %v33 = vld [vmem:[%s1 + $0x28] sm:$0xff]
    %v34 = vld [vmem:[%s1 + $0x30] sm:$0xff]
    %v35 = vld [vmem:[%s1 + $0x38] sm:$0xff]
    %v36 = vld [vmem:[%s1 + $0x40] sm:$0xff]
    %v37 = vld [vmem:[%s1 + $0x48] sm:$0xff]
    %v38 = vld [vmem:[%s1 + $0x50] sm:$0xff]
    %v39 = vld [vmem:[%s1 + $0x58] sm:$0xff]
    %v40 = vld [vmem:[%s1 + $0x60] sm:$0xff]
    %v41 = vld [vmem:[%s1 + $0x68] sm:$0xff]
    %v42 = vld [vmem:[%s1 + $0x70] sm:$0xff]
    %v43 = vld [vmem:[%s1 + $0x78] sm:$0xff]
    %v44 = vld [vmem:[%s1 + $0x80] sm:$0xff]
    %v45 = vld [vmem:[%s1 + $0x88] sm:$0xff]
    %v46 = vld [vmem:[%s1 + $0x90] sm:$0xff]
    %v47 = vld [vmem:[%s1 + $0x98] sm:$0xff]
    %v48 = vld [vmem:[%s1 + $0xa0] sm:$0xff]
    %v49 = vld [vmem:[%s1 + $0xa8] sm:$0xff]
    %v50 = vld [vmem:[%s1 + $0xb0] sm:$0xff]
    %v51 = vld [vmem:[%s1 + $0xb8] sm:$0xff]
    %v52 = vadd.f32 %v12, %v13
    %53 = vadd.xlane.f32.xlu0 %v52
    %v54 = vpop.xlane.xlu0 %53
    %v55 = vadd.f32 %v14, %v15
    %56 = vadd.xlane.f32.xlu0 %v55
    %v57 = vpop.xlane.xlu0 %56
    %v58 = vadd.f32 %v16, %v17
    %59 = vadd.xlane.f32.xlu0 %v58
    %v60 = vpop.xlane.xlu0 %59
    %v61 = vadd.f32 %v18, %v19
    %62 = vadd.xlane.f32.xlu0 %v61
    %v63 = vpop.xlane.xlu0 %62
    %v64 = vadd.f32 %v20, %v21
    %65 = vadd.xlane.f32.xlu0 %v64
    %v66 = vpop.xlane.xlu0 %65
    %v67 = vadd.f32 %v22, %v23
    %68 = vadd.xlane.f32.xlu0 %v67
    %v69 = vpop.xlane.xlu0 %68
    %v70 = vadd.f32 %v24, %v25
    %71 = vadd.xlane.f32.xlu0 %v70
    %v72 = vpop.xlane.xlu0 %71
    %v73 = vadd.f32 %v26, %v27
    %74 = vadd.xlane.f32.xlu0 %v73
    %v75 = vpop.xlane.xlu0 %74
    %v76 = vrcp.pop 256.0
    %v77 = vmul.f32 %v54, %v76
    %v78 = vmul.f32 %v57, %v76
    %v79 = vmul.f32 %v60, %v76
    %v80 = vmul.f32 %v63, %v76
    %v81 = vmul.f32 %v66, %v76
    %v82 = vmul.f32 %v69, %v76
    %v83 = vmul.f32 %v72, %v76
    %v84 = vmul.f32 %v75, %v76
    %v85 = vmul.f32 %v12, %v12
    %v86 = vmul.f32 %v13, %v13
    %v87 = vmul.f32 %v14, %v14
    %v88 = vmul.f32 %v15, %v15
    %v89 = vmul.f32 %v16, %v16
    %v90 = vmul.f32 %v17, %v17
    %v91 = vmul.f32 %v18, %v18
    %v92 = vmul.f32 %v19, %v19
    %v93 = vmul.f32 %v20, %v20
    %v94 = vmul.f32 %v21, %v21
    %v95 = vmul.f32 %v22, %v22
    %v96 = vmul.f32 %v23, %v23
    %v97 = vmul.f32 %v24, %v24
    %v98 = vmul.f32 %v25, %v25
    %v99 = vmul.f32 %v26, %v26
    %v100 = vmul.f32 %v27, %v27
    %v101 = vadd.f32 %v85, %v86
    %102 = vadd.xlane.f32.xlu0 %v101
    %v103 = vpop.xlane.xlu0 %102
    %v104 = vadd.f32 %v87, %v88
    %105 = vadd.xlane.f32.xlu0 %v104
    %v106 = vpop.xlane.xlu0 %105
    %v107 = vadd.f32 %v89, %v90
    %108 = vadd.xlane.f32.xlu0 %v107
    %v109 = vpop.xlane.xlu0 %108
    %v110 = vadd.f32 %v91, %v92
    %111 = vadd.xlane.f32.xlu0 %v110
    %v112 = vpop.xlane.xlu0 %111
    %v113 = vadd.f32 %v93, %v94
    %114 = vadd.xlane.f32.xlu0 %v113
    %v115 = vpop.xlane.xlu0 %114
    %v116 = vadd.f32 %v95, %v96
    %117 = vadd.xlane.f32.xlu0 %v116
    %v118 = vpop.xlane.xlu0 %117
    %v119 = vadd.f32 %v97, %v98
    %120 = vadd.xlane.f32.xlu0 %v119
    %v121 = vpop.xlane.xlu0 %120
    %v122 = vadd.f32 %v99, %v100
    %123 = vadd.xlane.f32.xlu0 %v122
    %v124 = vpop.xlane.xlu0 %123
    %v125 = vmul.f32 %v103, %v76
    %v126 = vmul.f32 %v106, %v76
    %v127 = vmul.f32 %v109, %v76
    %v128 = vmul.f32 %v112, %v76
    %v129 = vmul.f32 %v115, %v76
    %v130 = vmul.f32 %v118, %v76
    %v131 = vmul.f32 %v121, %v76
    %v132 = vmul.f32 %v124, %v76
    %v133 = vmul.f32 %v77, %v77
    %v134 = vmul.f32 %v78, %v78
    %v135 = vmul.f32 %v79, %v79
    %v136 = vmul.f32 %v80, %v80
    %v137 = vmul.f32 %v81, %v81
    %v138 = vmul.f32 %v82, %v82
    %v139 = vmul.f32 %v83, %v83
    %v140 = vmul.f32 %v84, %v84
    %v141 = vsub.f32 %v125, %v133
    %v142 = vsub.f32 %v126, %v134
    %v143 = vsub.f32 %v127, %v135
    %v144 = vsub.f32 %v128, %v136
    %v145 = vsub.f32 %v129, %v137
    %v146 = vsub.f32 %v130, %v138
    %v147 = vsub.f32 %v131, %v139
    %v148 = vsub.f32 %v132, %v140
    %v149 = vmax.f32 %v141, 0.0
    %v150 = vmax.f32 %v142, 0.0
    %v151 = vmax.f32 %v143, 0.0
    %v152 = vmax.f32 %v144, 0.0
    %v153 = vmax.f32 %v145, 0.0
    %v154 = vmax.f32 %v146, 0.0
    %v155 = vmax.f32 %v147, 0.0
    %v156 = vmax.f32 %v148, 0.0
    %v157 = vadd.f32 %v149, 1e-05
    %v158 = vadd.f32 %v150, 1e-05
    %v159 = vadd.f32 %v151, 1e-05
    %v160 = vadd.f32 %v152, 1e-05
    %v161 = vadd.f32 %v153, 1e-05
    %v162 = vadd.f32 %v154, 1e-05
    %v163 = vadd.f32 %v155, 1e-05
    %v164 = vadd.f32 %v156, 1e-05
    %v165 = vrsqrt.pop %v157
    %v166 = vrsqrt.pop %v158
    %v167 = vrsqrt.pop %v159
    %v168 = vrsqrt.pop %v160
    %v169 = vrsqrt.pop %v161
    %v170 = vrsqrt.pop %v162
    %v171 = vrsqrt.pop %v163
    %v172 = vrsqrt.pop %v164
    %v173 = vmul.f32 %v44, %v36
    %v174 = vmul.f32 %v45, %v37
    %v175 = vmul.f32 %v46, %v38
    %v176 = vmul.f32 %v47, %v39
    %v177 = vmul.f32 %v173, %v165
    %v178 = vmul.f32 %v174, %v166
    %v179 = vmul.f32 %v175, %v167
    %v180 = vmul.f32 %v176, %v168
    %v181 = vmul.f32 %v173, %v169
    %v182 = vmul.f32 %v174, %v170
    %v183 = vmul.f32 %v175, %v171
    %v184 = vmul.f32 %v176, %v172
    %v185 = vmul.f32 %v77, %v36
    %v186 = vmul.f32 %v78, %v37
    %v187 = vmul.f32 %v79, %v38
    %v188 = vmul.f32 %v80, %v39
    %v189 = vmul.f32 %v81, %v36
    %v190 = vmul.f32 %v82, %v37
    %v191 = vmul.f32 %v83, %v38
    %v192 = vmul.f32 %v84, %v39
    %v193 = vmul.f32 %v185, %v165
    %v194 = vmul.f32 %v186, %v166
    %v195 = vmul.f32 %v187, %v167
    %v196 = vmul.f32 %v188, %v168
    %v197 = vmul.f32 %v189, %v169
    %v198 = vmul.f32 %v190, %v170
    %v199 = vmul.f32 %v191, %v171
    %v200 = vmul.f32 %v192, %v172
    %v201 = vsub.f32 %v40, %v193
    %v202 = vsub.f32 %v41, %v194
    %v203 = vsub.f32 %v42, %v195
    %v204 = vsub.f32 %v43, %v196
    %v205 = vsub.f32 %v40, %v197
    %v206 = vsub.f32 %v41, %v198
    %v207 = vsub.f32 %v42, %v199
    %v208 = vsub.f32 %v43, %v200
    %v209 = vmul.f32 %v44, %v201
    %v210 = vmul.f32 %v45, %v202
    %v211 = vmul.f32 %v46, %v203
    %v212 = vmul.f32 %v47, %v204
    %v213 = vmul.f32 %v44, %v205
    %v214 = vmul.f32 %v45, %v206
    %v215 = vmul.f32 %v46, %v207
    %v216 = vmul.f32 %v47, %v208
    %v217 = vadd.f32 %v209, %v48
    %v218 = vadd.f32 %v210, %v49
    %v219 = vadd.f32 %v211, %v50
    %v220 = vadd.f32 %v212, %v51
    %v221 = vadd.f32 %v213, %v48
    %v222 = vadd.f32 %v214, %v49
    %v223 = vadd.f32 %v215, %v50
    %v224 = vadd.f32 %v216, %v51
    %v225 = vmul.f32 %v28, %v77
    %v226 = vmul.f32 %v29, %v78
    %v227 = vmul.f32 %v30, %v79
    %v228 = vmul.f32 %v31, %v80
    %v229 = vmul.f32 %v28, %v81
    %v230 = vmul.f32 %v29, %v82
    %v231 = vmul.f32 %v30, %v83
    %v232 = vmul.f32 %v31, %v84
    %v233 = vadd.f32 %v217, %v225
    %v234 = vadd.f32 %v218, %v226
    %v235 = vadd.f32 %v219, %v227
    %v236 = vadd.f32 %v220, %v228
    %v237 = vadd.f32 %v221, %v229
    %v238 = vadd.f32 %v222, %v230
    %v239 = vadd.f32 %v223, %v231
    %v240 = vadd.f32 %v224, %v232
    %v241 = vadd.f32 %v233, %v32
    %v242 = vadd.f32 %v234, %v33
    %v243 = vadd.f32 %v235, %v34
    %v244 = vadd.f32 %v236, %v35
    %v245 = vadd.f32 %v237, %v32
    %v246 = vadd.f32 %v238, %v33
    %v247 = vadd.f32 %v239, %v34
    %v248 = vadd.f32 %v240, %v35
    %250 = vset.pattern.permute.xlu0 0
    %251 = vperm.xlu0 %250, %v177
    %v252 = vpop.permute.xlu0 %251
    %255 = vset.pattern.permute.xlu0 0
    %256 = vperm.xlu0 %255, %v178
    %v257 = vpop.permute.xlu0 %256
    %260 = vset.pattern.permute.xlu0 0
    %261 = vperm.xlu0 %260, %v179
    %v262 = vpop.permute.xlu0 %261
    %265 = vset.pattern.permute.xlu0 0
    %266 = vperm.xlu0 %265, %v180
    %v267 = vpop.permute.xlu0 %266
    %270 = vset.pattern.permute.xlu0 0
    %271 = vperm.xlu0 %270, %v181
    %v272 = vpop.permute.xlu0 %271
    %275 = vset.pattern.permute.xlu0 0
    %276 = vperm.xlu0 %275, %v182
    %v277 = vpop.permute.xlu0 %276
    %280 = vset.pattern.permute.xlu0 0
    %281 = vperm.xlu0 %280, %v183
    %v282 = vpop.permute.xlu0 %281
    %285 = vset.pattern.permute.xlu0 0
    %286 = vperm.xlu0 %285, %v184
    %v287 = vpop.permute.xlu0 %286
    %v289 = vmul.f32 %v252, %v12
    %v290 = vmul.f32 %v252, %v13
    %v291 = vmul.f32 %v257, %v14
    %v292 = vmul.f32 %v257, %v15
    %v293 = vmul.f32 %v262, %v16
    %v294 = vmul.f32 %v262, %v17
    %v295 = vmul.f32 %v267, %v18
    %v296 = vmul.f32 %v267, %v19
    %v297 = vmul.f32 %v272, %v20
    %v298 = vmul.f32 %v272, %v21
    %v299 = vmul.f32 %v277, %v22
    %v300 = vmul.f32 %v277, %v23
    %v301 = vmul.f32 %v282, %v24
    %v302 = vmul.f32 %v282, %v25
    %v303 = vmul.f32 %v287, %v26
    %v304 = vmul.f32 %v287, %v27
    %306 = vset.pattern.permute.xlu0 0
    %307 = vperm.xlu0 %306, %v241
    %v308 = vpop.permute.xlu0 %307
    %311 = vset.pattern.permute.xlu0 0
    %312 = vperm.xlu0 %311, %v242
    %v313 = vpop.permute.xlu0 %312
    %316 = vset.pattern.permute.xlu0 0
    %317 = vperm.xlu0 %316, %v243
    %v318 = vpop.permute.xlu0 %317
    %321 = vset.pattern.permute.xlu0 0
    %322 = vperm.xlu0 %321, %v244
    %v323 = vpop.permute.xlu0 %322
    %326 = vset.pattern.permute.xlu0 0
    %327 = vperm.xlu0 %326, %v245
    %v328 = vpop.permute.xlu0 %327
    %331 = vset.pattern.permute.xlu0 0
    %332 = vperm.xlu0 %331, %v246
    %v333 = vpop.permute.xlu0 %332
    %336 = vset.pattern.permute.xlu0 0
    %337 = vperm.xlu0 %336, %v247
    %v338 = vpop.permute.xlu0 %337
    %341 = vset.pattern.permute.xlu0 0
    %342 = vperm.xlu0 %341, %v248
    %v343 = vpop.permute.xlu0 %342
    %v345 = vadd.f32 %v289, %v308
    %v346 = vadd.f32 %v290, %v308
    %v347 = vadd.f32 %v291, %v313
    %v348 = vadd.f32 %v292, %v313
    %v349 = vadd.f32 %v293, %v318
    %v350 = vadd.f32 %v294, %v318
    %v351 = vadd.f32 %v295, %v323
    %v352 = vadd.f32 %v296, %v323
    %v353 = vadd.f32 %v297, %v328
    %v354 = vadd.f32 %v298, %v328
    %v355 = vadd.f32 %v299, %v333
    %v356 = vadd.f32 %v300, %v333
    %v357 = vadd.f32 %v301, %v338
    %v358 = vadd.f32 %v302, %v338
    %v359 = vadd.f32 %v303, %v343
    %v360 = vadd.f32 %v304, %v343
    %v361 = vxor.u32 %v345, 2147483648
    %v362 = vxor.u32 %v346, 2147483648
    %v363 = vxor.u32 %v347, 2147483648
    %v364 = vxor.u32 %v348, 2147483648
    %v365 = vxor.u32 %v349, 2147483648
    %v366 = vxor.u32 %v350, 2147483648
    %v367 = vxor.u32 %v351, 2147483648
    %v368 = vxor.u32 %v352, 2147483648
    %v369 = vxor.u32 %v353, 2147483648
    %v370 = vxor.u32 %v354, 2147483648
    %v371 = vxor.u32 %v355, 2147483648
    %v372 = vxor.u32 %v356, 2147483648
    %v373 = vxor.u32 %v357, 2147483648
    %v374 = vxor.u32 %v358, 2147483648
    %v375 = vxor.u32 %v359, 2147483648
    %v376 = vxor.u32 %v360, 2147483648
    %v377 = vmul.f32 %v361, 1.442695
    %v378 = vpow.pop %v377
    %v379 = vmul.f32 %v362, 1.442695
    %v380 = vpow.pop %v379
    %v381 = vmul.f32 %v363, 1.442695
    %v382 = vpow.pop %v381
    %v383 = vmul.f32 %v364, 1.442695
    %v384 = vpow.pop %v383
    %v385 = vmul.f32 %v365, 1.442695
    %v386 = vpow.pop %v385
    %v387 = vmul.f32 %v366, 1.442695
    %v388 = vpow.pop %v387
    %v389 = vmul.f32 %v367, 1.442695
    %v390 = vpow.pop %v389
    %v391 = vmul.f32 %v368, 1.442695
    %v392 = vpow.pop %v391
    %v393 = vmul.f32 %v369, 1.442695
    %v394 = vpow.pop %v393
    %v395 = vmul.f32 %v370, 1.442695
    %v396 = vpow.pop %v395
    %v397 = vmul.f32 %v371, 1.442695
    %v398 = vpow.pop %v397
    %v399 = vmul.f32 %v372, 1.442695
    %v400 = vpow.pop %v399
    %v401 = vmul.f32 %v373, 1.442695
    %v402 = vpow.pop %v401
    %v403 = vmul.f32 %v374, 1.442695
    %v404 = vpow.pop %v403
    %v405 = vmul.f32 %v375, 1.442695
    %v406 = vpow.pop %v405
    %v407 = vmul.f32 %v376, 1.442695
    %v408 = vpow.pop %v407
    %v409 = vadd.f32 %v378, 1.0
    %v410 = vadd.f32 %v380, 1.0
    %v411 = vadd.f32 %v382, 1.0
    %v412 = vadd.f32 %v384, 1.0
    %v413 = vadd.f32 %v386, 1.0
    %v414 = vadd.f32 %v388, 1.0
    %v415 = vadd.f32 %v390, 1.0
    %v416 = vadd.f32 %v392, 1.0
    %v417 = vadd.f32 %v394, 1.0
    %v418 = vadd.f32 %v396, 1.0
    %v419 = vadd.f32 %v398, 1.0
    %v420 = vadd.f32 %v400, 1.0
    %v421 = vadd.f32 %v402, 1.0
    %v422 = vadd.f32 %v404, 1.0
    %v423 = vadd.f32 %v406, 1.0
    %v424 = vadd.f32 %v408, 1.0
    %v425 = vrcp.pop %v409
    %v426 = vmul.f32 1.0, %v425
    %v427 = vrcp.pop %v410
    %v428 = vmul.f32 1.0, %v427
    %v429 = vrcp.pop %v411
    %v430 = vmul.f32 1.0, %v429
    %v431 = vrcp.pop %v412
    %v432 = vmul.f32 1.0, %v431
    %v433 = vrcp.pop %v413
    %v434 = vmul.f32 1.0, %v433
    %v435 = vrcp.pop %v414
    %v436 = vmul.f32 1.0, %v435
    %v437 = vrcp.pop %v415
    %v438 = vmul.f32 1.0, %v437
    %v439 = vrcp.pop %v416
    %v440 = vmul.f32 1.0, %v439
    %v441 = vrcp.pop %v417
    %v442 = vmul.f32 1.0, %v441
    %v443 = vrcp.pop %v418
    %v444 = vmul.f32 1.0, %v443
    %v445 = vrcp.pop %v419
    %v446 = vmul.f32 1.0, %v445
    %v447 = vrcp.pop %v420
    %v448 = vmul.f32 1.0, %v447
    %v449 = vrcp.pop %v421
    %v450 = vmul.f32 1.0, %v449
    %v451 = vrcp.pop %v422
    %v452 = vmul.f32 1.0, %v451
    %v453 = vrcp.pop %v423
    %v454 = vmul.f32 1.0, %v453
    %v455 = vrcp.pop %v424
    %v456 = vmul.f32 1.0, %v455
    %v457 = vmul.f32 %v12, %v426
    %v458 = vmul.f32 %v13, %v428
    %v459 = vmul.f32 %v14, %v430
    %v460 = vmul.f32 %v15, %v432
    %v461 = vmul.f32 %v16, %v434
    %v462 = vmul.f32 %v17, %v436
    %v463 = vmul.f32 %v18, %v438
    %v464 = vmul.f32 %v19, %v440
    %v465 = vmul.f32 %v20, %v442
    %v466 = vmul.f32 %v21, %v444
    %v467 = vmul.f32 %v22, %v446
    %v468 = vmul.f32 %v23, %v448
    %v469 = vmul.f32 %v24, %v450
    %v470 = vmul.f32 %v25, %v452
    %v471 = vmul.f32 %v26, %v454
    %v472 = vmul.f32 %v27, %v456
    %473 = vst [vmem:[#allocation2] sm:$0xff] %v457
    %474 = vst [vmem:[#allocation2 + $0x8] sm:$0xff] %v458
    %475 = vst [vmem:[#allocation2 + $0x20] sm:$0xff] %v459
    %476 = vst [vmem:[#allocation2 + $0x28] sm:$0xff] %v460
    %477 = vst [vmem:[#allocation2 + $0x40] sm:$0xff] %v465
    %478 = vst [vmem:[#allocation2 + $0x48] sm:$0xff] %v466
    %479 = vst [vmem:[#allocation2 + $0x60] sm:$0xff] %v467
    %480 = vst [vmem:[#allocation2 + $0x68] sm:$0xff] %v468
    %481 = vst [vmem:[#allocation2 + $0x10] sm:$0xff] %v461
    %482 = vst [vmem:[#allocation2 + $0x18] sm:$0xff] %v462
    %483 = vst [vmem:[#allocation2 + $0x30] sm:$0xff] %v463
    %484 = vst [vmem:[#allocation2 + $0x38] sm:$0xff] %v464
    %485 = vst [vmem:[#allocation2 + $0x50] sm:$0xff] %v469
    %486 = vst [vmem:[#allocation2 + $0x58] sm:$0xff] %v470
    %487 = vst [vmem:[#allocation2 + $0x70] sm:$0xff] %v471
    %488 = vst [vmem:[#allocation2 + $0x78] sm:$0xff] %v472
    // Predicated region
    $region10: #{tpu_custom_call.1} parent=1 // pred_check
      _
    $region11: #{tpu_custom_call.1} parent=1 // pred_check_branch
      %490 = sbr.rel (0) target = $region13
    $region12: #{tpu_custom_call.1} parent=1 // pred_region
      %s492 = ssub.s32 2048, 2048
      %493 = vsyncadd [#allocation3], %s492
      %s494 = sshll.u32 [#allocation2], 4
      %s495 = int_to_ptr.vmem [resolvable:$true] %s494
      %500 = dma.vmem_to_hbm [thread:$0]  %s495, 2048, %s2, [#allocation3], 512, 512, 32
    $region13: #{tpu_custom_call.1} parent=1 // pred_fallthru
      _
    // Predicated region
    $region14: #{tpu_custom_call.1} parent=1 // pred_check
      _
    $region15: #{tpu_custom_call.1} parent=1 // pred_check_branch
      %502 = sbr.rel (0) target = $region17
    $region16: #{tpu_custom_call.1} parent=1 // pred_region
      %503 = dma.done [#allocation3], 2048
    $region17: #{tpu_custom_call.1} parent=1 // pred_fallthru
      _
    %504 = vsyncpa [#allocation3], 1

</llo_original>
